<compile_context>
chip_gen: v6e
topology: v6e:2x2x1
jax: 0.10.0
libtpu: 0.0.40
codegen_flags: <defaults>
</compile_context>

<pallas_src>
import functools

import jax
import jax.numpy as jnp
from jax.experimental import pallas as pl
from jax.experimental.pallas import tpu as pltpu

D_MODEL = 27
OUT_DIM = 2
TM_DEFAULT = 8192      # rows per block; multiple of 128 (it is the output lane dim)
MIN_SPLIT_ROWS = 4096  # above this, force >= 2 grid steps (v7x has 2 TensorCores)


def _round_up(x, n):
    return ((x + n - 1) // n) * n


def _linear_kernel(x_ref, w_ref, b_ref, o_ref, *, precision):
    # x_ref: (tm, D_MODEL)       activation block (pipelined)
    # w_ref: (OUT_DIM, D_MODEL)  weight, PyTorch layout, VMEM-resident
    # b_ref: (OUT_DIM, 1)        bias, VMEM-resident
    # o_ref: (OUT_DIM, tm)       transposed, lane-dense output block
    yt = jax.lax.dot_general(
        w_ref[...], x_ref[...],
        dimension_numbers=(((1,), (1,)), ((), ())),  # contract d_model of both
        preferred_element_type=jnp.float32,
        precision=precision,
    )
    o_ref[...] = (yt + b_ref[...]).astype(o_ref.dtype)


def direction_decode_forward(x, weight, bias, *,
                             precision=jax.lax.Precision.DEFAULT):
    """DirectionDecode.forward: y = x @ weight.T + bias.

    x: (..., D_MODEL) float32; weight: (OUT_DIM, D_MODEL) (PyTorch layout);
    bias: (OUT_DIM,).  Returns (..., OUT_DIM).
    precision: DEFAULT = single-pass bf16-operand/f32-accumulate MXU (fast,
    keeps the kernel DMA-bound); HIGHEST = multi-pass, ~f32-exact.
    """
    orig_shape = x.shape
    assert orig_shape[-1] == D_MODEL
    m = 1
    for s in orig_shape[:-1]:
        m *= s

    x2d = x.reshape(m, D_MODEL)
    b2d = bias.reshape(OUT_DIM, 1)

    # Block-size selection.
    if m <= MIN_SPLIT_ROWS:
        # One block covering all rows: block dims equal the array dims, so the
        # (8,128) divisibility rule is satisfied for any m (incl. tiny demos).
        tm = m
    else:
        # Multi-step grid: tm is the lane dim of the (OUT_DIM, tm) output
        # block, so it must be a multiple of 128.  Cap it so the grid has at
        # least 2 steps, keeping both v7x TensorCores busy.
        tm = min(TM_DEFAULT, _round_up(pl.cdiv(m, 2), 128))
    grid = (pl.cdiv(m, tm),)

    # Physical (padded/tiled) HBM traffic, not logical bytes:
    #   x read  : 128-lane padded (m, 27) -> ~m*128*4 bytes
    #   yT write: (2, m) 8-sublane padded -> ~8*m*4 bytes
    cost = pl.CostEstimate(
        flops=2 * m * D_MODEL * OUT_DIM,
        transcendentals=0,
        bytes_accessed=(m * 128 * 4) + (8 * m * 4) + 2 * (8 * 128 * 4),
    )

    kernel = functools.partial(_linear_kernel, precision=precision)

    out_t = pl.pallas_call(
        kernel,
        out_shape=jax.ShapeDtypeStruct((OUT_DIM, m), x.dtype),
        grid_spec=pltpu.PrefetchScalarGridSpec(
            num_scalar_prefetch=0,
            grid=grid,
            in_specs=[
                # x: tiled along rows -> double-buffered / pipelined by Pallas.
                pl.BlockSpec((tm, D_MODEL), lambda i: (i, 0)),
                # weight / bias: constant block index -> DMA'd once, resident.
                pl.BlockSpec((OUT_DIM, D_MODEL), lambda i: (0, 0)),
                pl.BlockSpec((OUT_DIM, 1), lambda i: (0, 0)),
            ],
            # Lane-dense output: tm sits on the 128-lane axis -> unmasked
            # full-lane stores and a compact (2, m) HBM buffer instead of a
            # 128-lane-padded (m, 2).
            out_specs=pl.BlockSpec((OUT_DIM, tm), lambda i: (0, i)),
        ),
        compiler_params=pltpu.CompilerParams(
            dimension_semantics=("parallel",),
            vmem_limit_bytes=32 * 1024 * 1024,
        ),
        cost_estimate=cost,
    )(x2d, weight, b2d)

    # Layout plumbing back to the PyTorch (..., OUT_DIM) contract.  Callers
    # that can consume the lane-dense (OUT_DIM, m) slab should skip this.
    return out_t.T.reshape(*orig_shape[:-1], OUT_DIM)


if __name__ == "__main__":
    key = jax.random.PRNGKey(0)
    k_x, k_w, k_b = jax.random.split(key, 3)

    batch, seq = 2, 8
    x = jax.random.normal(k_x, (batch, seq, D_MODEL), dtype=jnp.float32)

    # Deterministic params mimicking nn.Linear default init:
    # uniform(-1/sqrt(in_features), 1/sqrt(in_features))
    bound = 1.0 / (D_MODEL ** 0.5)
    weight = jax.random.uniform(
        k_w, (OUT_DIM, D_MODEL), minval=-bound, maxval=bound, dtype=jnp.float32
    )
    bias = jax.random.uniform(
        k_b, (OUT_DIM,), minval=-bound, maxval=bound, dtype=jnp.float32
    )

    # Precision-independent f32 reference (pure elementwise + reduce, no MXU).
    y_ref = jnp.sum(x[..., :, None] * weight.T, axis=-2) + bias

    # Fast path: pinned single-pass bf16-operand / f32-accumulate MXU dot.
    y_fast = jax.block_until_ready(direction_decode_forward(x, weight, bias))
    assert y_fast.shape == (batch, seq, OUT_DIM)
    assert bool(jnp.allclose(y_fast, y_ref, atol=2e-2, rtol=2e-2))

    # High-precision path: multi-pass MXU, matches the f32 reference tightly.
    y_hi = jax.block_until_ready(
        direction_decode_forward(x, weight, bias,
                                 precision=jax.lax.Precision.HIGHEST))
    assert y_hi.shape == (batch, seq, OUT_DIM)
    assert bool(jnp.allclose(y_hi, y_ref, atol=1e-5, rtol=1e-5))

    print("KERNEL_OK")
</pallas_src>

<mosaic_0001>
module attributes {stable_mosaic.version = 11 : i64} {
  func.func @_linear_kernel(%arg0: i32, %arg1: memref<16x27xf32, #tpu.memory_space<vmem>>, %arg2: memref<2x27xf32, #tpu.memory_space<vmem>>, %arg3: memref<2x1xf32, #tpu.memory_space<vmem>>, %arg4: memref<2x16xf32, #tpu.memory_space<vmem>>) attributes {dimension_semantics = [#tpu.dimension_semantics<parallel>], iteration_bounds = array<i64: 1>, scalar_prefetch = 0 : i64, scratch_operands = 0 : i64, tpu.core_type = #tpu.core_type<tc>, window_params = [{transform_indices = @transform_0, window_bounds = array<i64: 16, 27>}, {pipeline_mode = #tpu.pipeline_mode<synchronous>, transform_indices = @transform_1, window_bounds = array<i64: 2, 27>}, {pipeline_mode = #tpu.pipeline_mode<synchronous>, transform_indices = @transform_2, window_bounds = array<i64: 2, 1>}, {transform_indices = @transform_3, window_bounds = array<i64: 2, 16>}]} {
    %c0 = arith.constant 0 : index
    %c0_0 = arith.constant 0 : index
    %0 = vector.load %arg2[%c0, %c0_0] : memref<2x27xf32, #tpu.memory_space<vmem>>, vector<2x27xf32>
    %c0_1 = arith.constant 0 : index
    %c0_2 = arith.constant 0 : index
    %1 = vector.load %arg1[%c0_1, %c0_2] : memref<16x27xf32, #tpu.memory_space<vmem>>, vector<16x27xf32>
    %cst = arith.constant dense<0.000000e+00> : vector<2x16xf32>
    %2 = tpu.matmul %0, %1, %cst {dimension_numbers = #tpu.dot_dimension_numbers<[1], [1], [0], [0], [0, 0, 1, 0], [], []>} : vector<2x27xf32>, vector<16x27xf32>, vector<2x16xf32> -> vector<2x16xf32>
    %c0_3 = arith.constant 0 : index
    %c0_4 = arith.constant 0 : index
    %3 = vector.load %arg3[%c0_3, %c0_4] : memref<2x1xf32, #tpu.memory_space<vmem>>, vector<2x1xf32>
    %4 = vector.broadcast %3 : vector<2x1xf32> to vector<2x16xf32>
    %5 = arith.addf %2, %4 : vector<2x16xf32>
    %c0_5 = arith.constant 0 : index
    %c0_6 = arith.constant 0 : index
    %6 = vector.load %arg4[%c0_5, %c0_6] : memref<2x16xf32, #tpu.memory_space<vmem>>, vector<2x16xf32>
    tpu.vector_store %arg4[%c0_5, %c0_6], %5 {strides = array<i32>} : memref<2x16xf32, #tpu.memory_space<vmem>>, vector<2x16xf32>,
    return
  }
  func.func @transform_0(%arg0: i32) -> (i32, i32) {
    %c0_i32 = arith.constant 0 : i32
    %c0_i32_0 = arith.constant 0 : i32
    return %arg0, %c0_i32 : i32, i32
  }
  func.func @transform_1(%arg0: i32) -> (i32, i32) {
    %c0_i32 = arith.constant 0 : i32
    %c0_i32_0 = arith.constant 0 : i32
    %c0_i32_1 = arith.constant 0 : i32
    return %c0_i32, %c0_i32_0 : i32, i32
  }
  func.func @transform_2(%arg0: i32) -> (i32, i32) {
    %c0_i32 = arith.constant 0 : i32
    %c0_i32_0 = arith.constant 0 : i32
    %c0_i32_1 = arith.constant 0 : i32
    return %c0_i32, %c0_i32_0 : i32, i32
  }
  func.func @transform_3(%arg0: i32) -> (i32, i32) {
    %c0_i32 = arith.constant 0 : i32
    %c0_i32_0 = arith.constant 0 : i32
    return %c0_i32, %arg0 : i32, i32
  }
}

</mosaic_0001>

<llo_original>
// kernel: tpu_custom_call.1
$region0: #{tpu_custom_call.1}
  #allocation0 [shape = 'u32[]', space=smem, size = 0x4, offset = 0x4, fixed_abs, tag = 'smem constant byte address 0x4 - core index']
  #allocation1 [shape = 'u32[144,128]{1,0:T(1,128)}', space=vmem, size = 0x12000, scoped, tag = 'internal scratch']
  %s0 = inlined_call_operand.hbm [shape: f32[16,27], index: 0, kind: input, shape index: {}]
  %s1 = inlined_call_operand.vmem [shape: f32[2,27], index: 1, kind: input, shape index: {}]
  %s2 = inlined_call_operand.vmem [shape: f32[2,1], index: 2, kind: input, shape index: {}]
  %s3 = inlined_call_operand.hbm [shape: f32[2,16], index: 3, kind: output, shape index: {}]
  %s4 = sld [smem:[#allocation0]]
  $region26: #{tpu_custom_call.1} parent=0
    _
  %s6 = ssub.s32 1, %s4
  %s7 = scalar_select 0, %s6, %s4
  $region1: #{tpu_custom_call.1} parent=0
    #allocation2 [shape = 'u8[8192]{0}', space=vmem, size = 0x2000, scoped, tag = 'input window, operand 0, single buffered']
    #allocation3 [shape = 's32[1]{0}', space=sflag, size = 0x4, scoped, tag = 'scoped memory for tpu_custom_call.1']
    #allocation4 [shape = 's32[1]{0}', space=sflag, size = 0x4, scoped, tag = 'scoped memory for tpu_custom_call.1']
    #allocation5 [shape = 'u8[1024]{0}', space=vmem, size = 0x400, scoped, tag = 'output window, operand 0, single buffered']
    %8 = vsyncpa [#allocation3], 0
    %9 = vsyncpa [#allocation4], 0
    // Predicated region
    $region2: #{tpu_custom_call.1} parent=1 // pred_check
      _
    $region3: #{tpu_custom_call.1} parent=1 // pred_check_branch
      %11 = sbr.rel (0) target = $region5
    $region4: #{tpu_custom_call.1} parent=1 // pred_region
      %s13 = ssub.s32 256, 256
      %14 = vsyncadd [#allocation3], %s13
      %s15 = sshll.u32 [#allocation2], 4
      %s16 = int_to_ptr.vmem [resolvable:$true] %s15
      %21 = dma.hbm_to_vmem [thread:$0]  %s0, 256, %s16, [#allocation3], 128, 128, 8
    $region5: #{tpu_custom_call.1} parent=1 // pred_fallthru
      _
    // Predicated region
    $region6: #{tpu_custom_call.1} parent=1 // pred_check
      _
    $region7: #{tpu_custom_call.1} parent=1 // pred_check_branch
      %23 = sbr.rel (0) target = $region9
    $region8: #{tpu_custom_call.1} parent=1 // pred_region
      _
    $region9: #{tpu_custom_call.1} parent=1 // pred_fallthru
      _
    // Predicated region
    $region10: #{tpu_custom_call.1} parent=1 // pred_check
      _
    $region11: #{tpu_custom_call.1} parent=1 // pred_check_branch
      %25 = sbr.rel (0) target = $region13
    $region12: #{tpu_custom_call.1} parent=1 // pred_region
      _
    $region13: #{tpu_custom_call.1} parent=1 // pred_fallthru
      _
    // Predicated region
    $region14: #{tpu_custom_call.1} parent=1 // pred_check
      _
    $region15: #{tpu_custom_call.1} parent=1 // pred_check_branch
      %27 = sbr.rel (0) target = $region17
    $region16: #{tpu_custom_call.1} parent=1 // pred_region
      %28 = dma.done [#allocation3], 256
    $region17: #{tpu_custom_call.1} parent=1 // pred_fallthru
      _
    %v29 = vld [vmem:[%s1] sm:$0x3]
    %v30 = vld [vmem:[#allocation2] sm:$0xff]
    %v31 = vld [vmem:[#allocation2 + $0x8] sm:$0xff]
    %v32 = vld [vmem:[%s2] sm:$0x3]
    %34 = vset.pattern.permute.xlu0 0
    %35 = vperm.xlu0 %34, %v32
    %v36 = vpop.permute.xlu0 %35
    %vm38 = vcmask 220160
    %v40 = vsel %vm38, %v29, 0
    %v43 = vsel %vm38, %v30, 0
    %v46 = vsel %vm38, %v31, 0
    %48 = vmatprep.subr.mxu0 0.0
    %49 = vmatpush1.xpose.msra.mxu0 0.0
    %50 = vmatprep.subr.mxu0 0.0
    %51 = vmatpush1.xpose.msra.mxu0 0.0
    %52 = vmatprep.subr.mxu0 0.0
    %53 = vmatpush1.xpose.msra.mxu0 0.0
    %54 = vmatprep.subr.mxu0 0.0
    %55 = vmatpush1.xpose.msra.mxu0 0.0
    %56 = vmatprep.subr.mxu0 0.0
    %57 = vmatpush1.xpose.msra.mxu0 0.0
    %58 = vmatprep.subr.mxu0 0.0
    %59 = vmatpush1.xpose.msra.mxu0 0.0
    %60 = vmatprep.subr.mxu0 0.0
    %61 = vmatpush1.xpose.msra.mxu0 0.0
    %62 = vmatprep.subr.mxu0 0.0
    %63 = vmatpush1.xpose.msra.mxu0 0.0
    %64 = vmatprep.subr.mxu0 0.0
    %65 = vmatpush1.xpose.msra.mxu0 0.0
    %66 = vmatprep.subr.mxu0 0.0
    %67 = vmatpush1.xpose.msra.mxu0 0.0
    %68 = vmatprep.subr.mxu0 0.0
    %69 = vmatpush1.xpose.msra.mxu0 0.0
    %70 = vmatprep.subr.mxu0 0.0
    %71 = vmatpush1.xpose.msra.mxu0 0.0
    %72 = vmatprep.subr.mxu0 0.0
    %73 = vmatpush1.xpose.msra.mxu0 0.0
    %74 = vmatprep.subr.mxu0 0.0
    %75 = vmatpush1.xpose.msra.mxu0 0.0
    %76 = vmatprep.subr.mxu0 0.0
    %77 = vmatpush1.xpose.msra.mxu0 %v46
    %78 = vmatprep.subr.mxu0 0.0
    %79 = vmatpush1.xpose.msra.mxu0 %v43
    %80 = vmatprep.subr.mxu0 0.0
    %81 = vmatpush2.xpose.msra.mxu0 0.0
    %82 = vmatprep.subr.mxu0 0.0
    %83 = vmatpush2.xpose.msra.mxu0 0.0
    %84 = vmatprep.subr.mxu0 0.0
    %85 = vmatpush2.xpose.msra.mxu0 0.0
    %86 = vmatprep.subr.mxu0 0.0
    %87 = vmatpush2.xpose.msra.mxu0 0.0
    %88 = vmatprep.subr.mxu0 0.0
    %89 = vmatpush2.xpose.msra.mxu0 0.0
    %90 = vmatprep.subr.mxu0 0.0
    %91 = vmatpush2.xpose.msra.mxu0 0.0
    %92 = vmatprep.subr.mxu0 0.0
    %93 = vmatpush2.xpose.msra.mxu0 0.0
    %94 = vmatprep.subr.mxu0 0.0
    %95 = vmatpush2.xpose.msra.mxu0 0.0
    %96 = vmatprep.subr.mxu0 0.0
    %97 = vmatpush2.xpose.msra.mxu0 0.0
    %98 = vmatprep.subr.mxu0 0.0
    %99 = vmatpush2.xpose.msra.mxu0 0.0
    %100 = vmatprep.subr.mxu0 0.0
    %101 = vmatpush2.xpose.msra.mxu0 0.0
    %102 = vmatprep.subr.mxu0 0.0
    %103 = vmatpush2.xpose.msra.mxu0 0.0
    %104 = vmatprep.subr.mxu0 0.0
    %105 = vmatpush2.xpose.msra.mxu0 0.0
    %106 = vmatprep.subr.mxu0 0.0
    %107 = vmatpush2.xpose.msra.mxu0 0.0
    %108 = vmatprep.subr.mxu0 0.0
    %109 = vmatpush2.xpose.msra.mxu0 0.0
    %110 = vmatprep.subr.mxu0 0.0
    %111 = vmatpush2.xpose.msra.mxu0 0.0
    %112 = vmatprep.mubr.f32.mxu0 0.0
    %113 = vmatmul.mubr.f32.gmra.mxu0 %v40
    %v114 = vpop.f32.mrf.mxu0
    %v115 = vadd.f32 %v36, %v114
    %v116 = vpop.f32.mrf.mxu0
    %117 = vdwg.mxu0
    %vm118 = vcmask 123904
    %119 = vst.msk [vmem:[#allocation5] sm:$0x3] %vm118, %v115
    // Predicated region
    $region18: #{tpu_custom_call.1} parent=1 // pred_check
      _
    $region19: #{tpu_custom_call.1} parent=1 // pred_check_branch
      %121 = sbr.rel (0) target = $region21
    $region20: #{tpu_custom_call.1} parent=1 // pred_region
      %s123 = ssub.s32 32, 32
      %124 = vsyncadd [#allocation4], %s123
      %s126 = sshll.u32 [#allocation5], 4
      %s127 = int_to_ptr.vmem [resolvable:$true] %s126
      %129 = dma.vmem_to_hbm [thread:$0]  %s127, 32, %s3, [#allocation4]
    $region21: #{tpu_custom_call.1} parent=1 // pred_fallthru
      _
    // Predicated region
    $region22: #{tpu_custom_call.1} parent=1 // pred_check
      _
    $region23: #{tpu_custom_call.1} parent=1 // pred_check_branch
      %131 = sbr.rel (0) target = $region25
    $region24: #{tpu_custom_call.1} parent=1 // pred_region
      %132 = dma.done [#allocation4], 32
    $region25: #{tpu_custom_call.1} parent=1 // pred_fallthru
      _
    %133 = vsyncpa [#allocation3], 1
    %134 = vsyncpa [#allocation4], 1

</llo_original>
